<compile_context>
chip_gen: v5e
topology: v5e:2x2
jax: 0.10.0
libtpu: 0.0.40
codegen_flags: <defaults>
</compile_context>

<pallas_src>
import math

import jax
import jax.numpy as jnp
from jax import lax
from jax.experimental import pallas as pl
from jax.experimental.pallas import tpu as pltpu


def _cq_attention_kernel(c_ref, q_ref, cbias_ref, qbias_ref, params_ref,
                         bias_ref, out_ref):
    f32 = jnp.float32
    bf16 = jnp.bfloat16

    d = c_ref.shape[0]

    w4c = params_ref[:, 0:1]      # (d, 1) f32
    w4q = params_ref[:, 1:2]      # (d, 1) f32
    w4mlu = params_ref[:, 2:3]    # (d, 1) f32
    bias = bias_ref[0, 0]         # f32 scalar (SMEM)

    c_bf = c_ref[...]             # (d, Lc) bf16, channel-first
    q_bf = q_ref[...]             # (d, Lq) bf16
    cbias = cbias_ref[...]        # (1, Lc) f32 additive mask (0 / -1e30)
    qbias = qbias_ref[...]        # (Lq, 1) f32 additive mask (0 / -1e30)

    # Trilinear similarity, computed directly in the transposed layout:
    #   S^T[j, i] = C_i.w4C + Q_j.w4Q + (C_i * w4mlu).Q_j + bias
    # w4C term -> VPU/XLU reduction; w4Q term folded into the MXU operand
    # (m = C*w4mlu + w4Q).  The f32 copy of C is only live through these two
    # lines (per perf review).
    c_f = c_bf.astype(f32)
    sub0 = jnp.sum(c_f * w4c, axis=0, keepdims=True)                # (1, Lc)
    m_bf = (c_f * w4mlu + w4q).astype(bf16)                         # (d, Lc)

    st = lax.dot_general(q_bf, m_bf, (((0,), (0,)), ((), ())),
                         preferred_element_type=f32)                # (Lq, Lc)
    st = st + sub0 + bias

    # Masked softmaxes in f32 via additive biases.  S1^T normalizes over Lq
    # (axis 0), S2^T normalizes over Lc (axis 1).
    st1 = st + qbias
    st2 = st + cbias

    e1 = jnp.exp(st1 - jnp.max(st1, axis=0, keepdims=True))
    s1t = (e1 * pl.reciprocal(jnp.sum(e1, axis=0, keepdims=True),
                              approx=True)).astype(bf16)            # (Lq, Lc)
    e2 = jnp.exp(st2 - jnp.max(st2, axis=1, keepdims=True))
    s2t = (e2 * pl.reciprocal(jnp.sum(e2, axis=1, keepdims=True),
                              approx=True)).astype(bf16)            # (Lq, Lc)

    # A^T = Q^T @ S1^T                                              (d, Lc)
    a_t = jnp.dot(q_bf, s1t, preferred_element_type=f32)
    # B^T = (C^T @ S2) @ S1^T  (reassociated -> no (Lc, Lc) intermediate)
    r_t = lax.dot_general(c_bf, s2t, (((1,), (1,)), ((), ())),
                          preferred_element_type=f32)               # (d, Lq)
    b_t = jnp.dot(r_t.astype(bf16), s1t,
                  preferred_element_type=f32)                       # (d, Lc)

    # out = concat([C, A, C*A, C*B]) along channels, emitted as four
    # lane-dense stores into static sub-slices of the output block.
    out_ref[0:d, :] = c_bf.astype(out_ref.dtype)
    out_ref[d:2 * d, :] = a_t.astype(out_ref.dtype)
    out_ref[2 * d:3 * d, :] = (c_bf.astype(f32) * a_t).astype(out_ref.dtype)
    out_ref[3 * d:4 * d, :] = (c_bf.astype(f32) * b_t).astype(out_ref.dtype)


def _round_up(x, m):
    return ((x + m - 1) // m) * m


def cq_attention(C, Q, Cmask, Qmask, w4C, w4Q, w4mlu, bias, *,
                 out_dtype=jnp.bfloat16):
    """C: (B, d_model, Lc), Q: (B, d_model, Lq), masks: (B, Lc)/(B, Lq).

    Returns (B, 4*d_model, Lc), matching the PyTorch module (eval mode).
    """
    B, d_model, Lc = C.shape
    Lq = Q.shape[2]

    LANE = 128
    NEG = jnp.float32(-1e30)
    Lc_p = _round_up(Lc, LANE)
    Lq_p = _round_up(Lq, LANE)

    # bf16 I/O for the big tensors; pad seq dims to lane-dense widths
    # (zero padding on C/Q, -1e30 padding folded into the mask biases).
    c = C.astype(jnp.bfloat16)
    q = Q.astype(jnp.bfloat16)
    if Lc_p != Lc:
        c = jnp.pad(c, ((0, 0), (0, 0), (0, Lc_p - Lc)))
    if Lq_p != Lq:
        q = jnp.pad(q, ((0, 0), (0, 0), (0, Lq_p - Lq)))

    cbias = jnp.where(Cmask.astype(jnp.float32) > 0.0, 0.0, NEG)    # (B, Lc)
    qbias = jnp.where(Qmask.astype(jnp.float32) > 0.0, 0.0, NEG)    # (B, Lq)
    if Lc_p != Lc:
        cbias = jnp.pad(cbias, ((0, 0), (0, Lc_p - Lc)),
                        constant_values=-1e30)
    if Lq_p != Lq:
        qbias = jnp.pad(qbias, ((0, 0), (0, Lq_p - Lq)),
                        constant_values=-1e30)
    cbias = cbias.reshape(B, 1, Lc_p).astype(jnp.float32)
    qbias = qbias.reshape(B, Lq_p, 1).astype(jnp.float32)

    # Pack the three (d,1) parameter vectors into one small (d, 8) block.
    params = jnp.zeros((d_model, 8), jnp.float32)
    params = params.at[:, 0].set(w4C.astype(jnp.float32).reshape(d_model))
    params = params.at[:, 1].set(w4Q.astype(jnp.float32).reshape(d_model))
    params = params.at[:, 2].set(w4mlu.astype(jnp.float32).reshape(d_model))
    bias2 = bias.astype(jnp.float32).reshape(1, 1)

    grid = (B,)   # one batch element per grid step (>= 2 steps per TC on v7x)

    out = pl.pallas_call(
        _cq_attention_kernel,
        out_shape=jax.ShapeDtypeStruct((B, 4 * d_model, Lc_p), out_dtype),
        grid_spec=pltpu.PrefetchScalarGridSpec(
            num_scalar_prefetch=0,
            grid=grid,
            in_specs=[
                pl.BlockSpec((None, d_model, Lc_p), lambda b: (b, 0, 0)),  # C
                pl.BlockSpec((None, d_model, Lq_p), lambda b: (b, 0, 0)),  # Q
                pl.BlockSpec((None, 1, Lc_p), lambda b: (b, 0, 0)),     # cbias
                pl.BlockSpec((None, Lq_p, 1), lambda b: (b, 0, 0)),     # qbias
                pl.BlockSpec((d_model, 8), lambda b: (0, 0)),           # params
                pl.BlockSpec(memory_space=pltpu.MemorySpace.SMEM),      # bias
            ],
            out_specs=pl.BlockSpec((None, 4 * d_model, Lc_p),
                                   lambda b: (b, 0, 0)),
        ),
        compiler_params=pltpu.CompilerParams(
            dimension_semantics=("parallel",),
            vmem_limit_bytes=32 * 1024 * 1024),
    )(c, q, cbias, qbias, params, bias2)

    if Lc_p != Lc:
        # Contract requires (B, 4*d_model, Lc); lane-aligned callers (Lc a
        # multiple of 128) skip this copy entirely.
        out = out[:, :, :Lc]
    return out


def _reference(C, Q, Cmask, Qmask, w4C, w4Q, w4mlu, bias):
    """Pure-JAX (f32) mirror of the PyTorch forward (eval mode)."""
    c = jnp.transpose(C, (0, 2, 1)).astype(jnp.float32)
    q = jnp.transpose(Q, (0, 2, 1)).astype(jnp.float32)
    B, Lc, d = c.shape
    Lq = q.shape[1]
    sub0 = jnp.matmul(c, w4C)                                      # (B, Lc, 1)
    sub1 = jnp.transpose(jnp.matmul(q, w4Q), (0, 2, 1))            # (B, 1, Lq)
    sub2 = jnp.matmul(c * w4mlu, jnp.transpose(q, (0, 2, 1)))      # (B, Lc, Lq)
    S = sub0 + sub1 + sub2 + bias
    cm = Cmask.reshape(B, Lc, 1).astype(jnp.float32)
    qm = Qmask.reshape(B, 1, Lq).astype(jnp.float32)
    S1 = jax.nn.softmax(S * qm + (1.0 - qm) * -1e30, axis=2)
    S2 = jax.nn.softmax(S * cm + (1.0 - cm) * -1e30, axis=1)
    A = jnp.matmul(S1, q)
    Bm = jnp.matmul(jnp.matmul(S1, jnp.transpose(S2, (0, 2, 1))), c)
    out = jnp.concatenate([c, A, c * A, c * Bm], axis=2)
    return jnp.transpose(out, (0, 2, 1))


if __name__ == "__main__":
    B, d_model, Lc, Lq = 4, 32, 16, 12

    key = jax.random.PRNGKey(0)
    kC, kQ, k1, k2, k3 = jax.random.split(key, 5)

    # Inputs in the PyTorch layout: (batch, d_model, L)
    C = jax.random.normal(kC, (B, d_model, Lc), jnp.float32)
    Q = jax.random.normal(kQ, (B, d_model, Lq), jnp.float32)
    clen = jnp.array([Lc, 13, 10, Lc])
    qlen = jnp.array([Lq, 9, 12, 5])
    Cmask = (jnp.arange(Lc)[None, :] < clen[:, None]).astype(jnp.float32)
    Qmask = (jnp.arange(Lq)[None, :] < qlen[:, None]).astype(jnp.float32)

    # Deterministic parameter init (xavier_uniform-style bounds, zero bias).
    bC = math.sqrt(6.0 / (d_model + 1))
    w4C = jax.random.uniform(k1, (d_model, 1), jnp.float32, -bC, bC)
    w4Q = jax.random.uniform(k2, (d_model, 1), jnp.float32, -bC, bC)
    bM = math.sqrt(6.0 / (2 * d_model))
    w4mlu = jax.random.uniform(k3, (1, 1, d_model), jnp.float32, -bM, bM)
    bias = jnp.zeros((1,), jnp.float32)

    out = cq_attention(C, Q, Cmask, Qmask, w4C, w4Q, w4mlu, bias)
    out = jax.block_until_ready(out)
    assert out.shape == (B, 4 * d_model, Lc), out.shape

    # Compare in f32 against a reference run on the same bf16-rounded inputs
    # (kernel matmul operands are bf16 with f32 accumulation + approx recip,
    # hence the bf16-level tolerance).
    C_r = C.astype(jnp.bfloat16).astype(jnp.float32)
    Q_r = Q.astype(jnp.bfloat16).astype(jnp.float32)
    ref = _reference(C_r, Q_r, Cmask, Qmask, w4C, w4Q, w4mlu, bias)
    out_f32 = out.astype(jnp.float32)
    max_err = float(jnp.max(jnp.abs(out_f32 - ref)))
    assert jnp.allclose(out_f32, ref, atol=5e-2, rtol=5e-2), max_err

    print("KERNEL_OK")
</pallas_src>

<mosaic_0001>
module attributes {stable_mosaic.version = 11 : i64} {
  func.func @_cq_attention_kernel(%arg0: i32, %arg1: memref<1x32x128xbf16, #tpu.memory_space<vmem>>, %arg2: memref<1x32x128xbf16, #tpu.memory_space<vmem>>, %arg3: memref<1x1x128xf32, #tpu.memory_space<vmem>>, %arg4: memref<1x128x1xf32, #tpu.memory_space<vmem>>, %arg5: memref<32x8xf32, #tpu.memory_space<vmem>>, %arg6: memref<1x1xf32, #tpu.memory_space<smem>>, %arg7: memref<1x128x128xbf16, #tpu.memory_space<vmem>>) attributes {dimension_semantics = [#tpu.dimension_semantics<parallel>], iteration_bounds = array<i64: 4>, scalar_prefetch = 0 : i64, scratch_operands = 0 : i64, tpu.core_type = #tpu.core_type<tc>, window_params = [{transform_indices = @transform_0, window_bounds = array<i64: 1, 32, 128>}, {transform_indices = @transform_1, window_bounds = array<i64: 1, 32, 128>}, {transform_indices = @transform_2, window_bounds = array<i64: 1, 1, 128>}, {transform_indices = @transform_3, window_bounds = array<i64: 1, 128, 1>}, {pipeline_mode = #tpu.pipeline_mode<synchronous>, transform_indices = @transform_4, window_bounds = array<i64: 32, 8>}, {transform_indices = @transform_5, window_bounds = array<i64: 1, 1>}, {transform_indices = @transform_6, window_bounds = array<i64: 1, 128, 128>}]} {
    %c0 = arith.constant 0 : index
    %c0_0 = arith.constant 0 : index
    %0 = vector.load %arg5[%c0, %c0_0] : memref<32x8xf32, #tpu.memory_space<vmem>>, vector<32x1xf32>
    %c0_1 = arith.constant 0 : index
    %c1 = arith.constant 1 : index
    %1 = vector.load %arg5[%c0_1, %c1] : memref<32x8xf32, #tpu.memory_space<vmem>>, vector<32x1xf32>
    %c0_2 = arith.constant 0 : index
    %c2 = arith.constant 2 : index
    %2 = vector.load %arg5[%c0_2, %c2] : memref<32x8xf32, #tpu.memory_space<vmem>>, vector<32x1xf32>
    %c0_3 = arith.constant 0 : index
    %c0_4 = arith.constant 0 : index
    %3 = memref.load %arg6[%c0_3, %c0_4] : memref<1x1xf32, #tpu.memory_space<smem>>
    %c0_5 = arith.constant 0 : index
    %c0_6 = arith.constant 0 : index
    %c0_7 = arith.constant 0 : index
    %4 = vector.load %arg1[%c0_5, %c0_6, %c0_7] : memref<1x32x128xbf16, #tpu.memory_space<vmem>>, vector<1x32x128xbf16>
    %5 = vector.shape_cast %4 : vector<1x32x128xbf16> to vector<32x128xbf16>
    %c0_8 = arith.constant 0 : index
    %c0_9 = arith.constant 0 : index
    %c0_10 = arith.constant 0 : index
    %6 = vector.load %arg2[%c0_8, %c0_9, %c0_10] : memref<1x32x128xbf16, #tpu.memory_space<vmem>>, vector<1x32x128xbf16>
    %7 = vector.shape_cast %6 : vector<1x32x128xbf16> to vector<32x128xbf16>
    %c0_11 = arith.constant 0 : index
    %c0_12 = arith.constant 0 : index
    %c0_13 = arith.constant 0 : index
    %8 = vector.load %arg3[%c0_11, %c0_12, %c0_13] : memref<1x1x128xf32, #tpu.memory_space<vmem>>, vector<1x1x128xf32>
    %9 = vector.shape_cast %8 : vector<1x1x128xf32> to vector<1x128xf32>
    %c0_14 = arith.constant 0 : index
    %c0_15 = arith.constant 0 : index
    %c0_16 = arith.constant 0 : index
    %10 = vector.load %arg4[%c0_14, %c0_15, %c0_16] : memref<1x128x1xf32, #tpu.memory_space<vmem>>, vector<1x128x1xf32>
    %11 = vector.shape_cast %10 : vector<1x128x1xf32> to vector<128x1xf32>
    %12 = arith.extf %5 : vector<32x128xbf16> to vector<32x128xf32>
    %13 = vector.broadcast %0 : vector<32x1xf32> to vector<32x128xf32>
    %14 = arith.mulf %12, %13 : vector<32x128xf32>
    %cst = arith.constant dense<0.000000e+00> : vector<128xf32>
    %15 = vector.multi_reduction <add>, %14, %cst [0] : vector<32x128xf32> to vector<128xf32>
    %16 = vector.shape_cast %15 : vector<128xf32> to vector<1x128xf32>
    %17 = vector.broadcast %2 : vector<32x1xf32> to vector<32x128xf32>
    %18 = arith.mulf %12, %17 : vector<32x128xf32>
    %19 = vector.broadcast %1 : vector<32x1xf32> to vector<32x128xf32>
    %20 = arith.addf %18, %19 : vector<32x128xf32>
    %21 = arith.truncf %20 : vector<32x128xf32> to vector<32x128xbf16>
    %cst_17 = arith.constant dense<0.000000e+00> : vector<128x128xf32>
    %22 = tpu.matmul %7, %21, %cst_17 {dimension_numbers = #tpu.dot_dimension_numbers<[0], [0], [1], [1], [0, 1, 1, 1], [], []>} : vector<32x128xbf16>, vector<32x128xbf16>, vector<128x128xf32> -> vector<128x128xf32>
    %23 = vector.broadcast %16 : vector<1x128xf32> to vector<128x128xf32>
    %24 = arith.addf %22, %23 : vector<128x128xf32>
    %25 = vector.broadcast %3 : f32 to vector<128x128xf32>
    %26 = arith.addf %24, %25 : vector<128x128xf32>
    %27 = vector.broadcast %11 : vector<128x1xf32> to vector<128x128xf32>
    %28 = arith.addf %26, %27 : vector<128x128xf32>
    %29 = vector.broadcast %9 : vector<1x128xf32> to vector<128x128xf32>
    %30 = arith.addf %26, %29 : vector<128x128xf32>
    %cst_18 = arith.constant dense<0xFF800000> : vector<128xf32>
    %31 = vector.multi_reduction <maximumf>, %28, %cst_18 [0] : vector<128x128xf32> to vector<128xf32>
    %32 = vector.shape_cast %31 : vector<128xf32> to vector<1x128xf32>
    %33 = vector.broadcast %32 : vector<1x128xf32> to vector<128x128xf32>
    %34 = arith.subf %28, %33 : vector<128x128xf32>
    %35 = math.exp %34 : vector<128x128xf32>
    %cst_19 = arith.constant dense<0.000000e+00> : vector<128xf32>
    %36 = vector.multi_reduction <add>, %35, %cst_19 [0] : vector<128x128xf32> to vector<128xf32>
    %37 = vector.shape_cast %36 : vector<128xf32> to vector<1x128xf32>
    %38 = tpu.reciprocal %37 {approx = true} : vector<1x128xf32> -> vector<1x128xf32>
    %39 = vector.broadcast %38 : vector<1x128xf32> to vector<128x128xf32>
    %40 = arith.mulf %35, %39 : vector<128x128xf32>
    %41 = arith.truncf %40 : vector<128x128xf32> to vector<128x128xbf16>
    %cst_20 = arith.constant dense<0xFF800000> : vector<128xf32>
    %42 = vector.multi_reduction <maximumf>, %30, %cst_20 [1] : vector<128x128xf32> to vector<128xf32>
    %43 = vector.shape_cast %42 : vector<128xf32> to vector<128x1xf32>
    %44 = vector.broadcast %43 : vector<128x1xf32> to vector<128x128xf32>
    %45 = arith.subf %30, %44 : vector<128x128xf32>
    %46 = math.exp %45 : vector<128x128xf32>
    %cst_21 = arith.constant dense<0.000000e+00> : vector<128xf32>
    %47 = vector.multi_reduction <add>, %46, %cst_21 [1] : vector<128x128xf32> to vector<128xf32>
    %48 = vector.shape_cast %47 : vector<128xf32> to vector<128x1xf32>
    %49 = tpu.reciprocal %48 {approx = true} : vector<128x1xf32> -> vector<128x1xf32>
    %50 = vector.broadcast %49 : vector<128x1xf32> to vector<128x128xf32>
    %51 = arith.mulf %46, %50 : vector<128x128xf32>
    %52 = arith.truncf %51 : vector<128x128xf32> to vector<128x128xbf16>
    %cst_22 = arith.constant dense<0.000000e+00> : vector<32x128xf32>
    %53 = tpu.matmul %7, %41, %cst_22 {dimension_numbers = #tpu.dot_dimension_numbers<[1], [0], [0], [1], [0, 0, 1, 1], [], []>} : vector<32x128xbf16>, vector<128x128xbf16>, vector<32x128xf32> -> vector<32x128xf32>
    %cst_23 = arith.constant dense<0.000000e+00> : vector<32x128xf32>
    %54 = tpu.matmul %5, %52, %cst_23 {dimension_numbers = #tpu.dot_dimension_numbers<[1], [1], [0], [0], [0, 0, 1, 0], [], []>} : vector<32x128xbf16>, vector<128x128xbf16>, vector<32x128xf32> -> vector<32x128xf32>
    %55 = arith.truncf %54 : vector<32x128xf32> to vector<32x128xbf16>
    %cst_24 = arith.constant dense<0.000000e+00> : vector<32x128xf32>
    %56 = tpu.matmul %55, %41, %cst_24 {dimension_numbers = #tpu.dot_dimension_numbers<[1], [0], [0], [1], [0, 0, 1, 1], [], []>} : vector<32x128xbf16>, vector<128x128xbf16>, vector<32x128xf32> -> vector<32x128xf32>
    %c0_25 = arith.constant 0 : index
    %c0_26 = arith.constant 0 : index
    %c0_27 = arith.constant 0 : index
    %57 = vector.load %arg7[%c0_25, %c0_26, %c0_27] : memref<1x128x128xbf16, #tpu.memory_space<vmem>>, vector<1x32x128xbf16>
    %58 = vector.shape_cast %57 : vector<1x32x128xbf16> to vector<32x128xbf16>
    %59 = vector.shape_cast %5 : vector<32x128xbf16> to vector<1x32x128xbf16>
    tpu.vector_store %arg7[%c0_25, %c0_26, %c0_27], %59 {strides = array<i32>} : memref<1x128x128xbf16, #tpu.memory_space<vmem>>, vector<1x32x128xbf16>,
    %60 = arith.truncf %53 : vector<32x128xf32> to vector<32x128xbf16>
    %c0_28 = arith.constant 0 : index
    %c32 = arith.constant 32 : index
    %c0_29 = arith.constant 0 : index
    %61 = vector.load %arg7[%c0_28, %c32, %c0_29] : memref<1x128x128xbf16, #tpu.memory_space<vmem>>, vector<1x32x128xbf16>
    %62 = vector.shape_cast %61 : vector<1x32x128xbf16> to vector<32x128xbf16>
    %63 = vector.shape_cast %60 : vector<32x128xbf16> to vector<1x32x128xbf16>
    tpu.vector_store %arg7[%c0_28, %c32, %c0_29], %63 {strides = array<i32>} : memref<1x128x128xbf16, #tpu.memory_space<vmem>>, vector<1x32x128xbf16>,
    %64 = arith.extf %5 : vector<32x128xbf16> to vector<32x128xf32>
    %65 = arith.mulf %64, %53 : vector<32x128xf32>
    %66 = arith.truncf %65 : vector<32x128xf32> to vector<32x128xbf16>
    %c0_30 = arith.constant 0 : index
    %c64 = arith.constant 64 : index
    %c0_31 = arith.constant 0 : index
    %67 = vector.load %arg7[%c0_30, %c64, %c0_31] : memref<1x128x128xbf16, #tpu.memory_space<vmem>>, vector<1x32x128xbf16>
    %68 = vector.shape_cast %67 : vector<1x32x128xbf16> to vector<32x128xbf16>
    %69 = vector.shape_cast %66 : vector<32x128xbf16> to vector<1x32x128xbf16>
    tpu.vector_store %arg7[%c0_30, %c64, %c0_31], %69 {strides = array<i32>} : memref<1x128x128xbf16, #tpu.memory_space<vmem>>, vector<1x32x128xbf16>,
    %70 = arith.extf %5 : vector<32x128xbf16> to vector<32x128xf32>
    %71 = arith.mulf %70, %56 : vector<32x128xf32>
    %72 = arith.truncf %71 : vector<32x128xf32> to vector<32x128xbf16>
    %c0_32 = arith.constant 0 : index
    %c96 = arith.constant 96 : index
    %c0_33 = arith.constant 0 : index
    %73 = vector.load %arg7[%c0_32, %c96, %c0_33] : memref<1x128x128xbf16, #tpu.memory_space<vmem>>, vector<1x32x128xbf16>
    %74 = vector.shape_cast %73 : vector<1x32x128xbf16> to vector<32x128xbf16>
    %75 = vector.shape_cast %72 : vector<32x128xbf16> to vector<1x32x128xbf16>
    tpu.vector_store %arg7[%c0_32, %c96, %c0_33], %75 {strides = array<i32>} : memref<1x128x128xbf16, #tpu.memory_space<vmem>>, vector<1x32x128xbf16>,
    return
  }
  func.func @transform_0(%arg0: i32) -> (i32, i32, i32) {
    %c0_i32 = arith.constant 0 : i32
    %c0_i32_0 = arith.constant 0 : i32
    %c0_i32_1 = arith.constant 0 : i32
    return %arg0, %c0_i32, %c0_i32_0 : i32, i32, i32
  }
  func.func @transform_1(%arg0: i32) -> (i32, i32, i32) {
    %c0_i32 = arith.constant 0 : i32
    %c0_i32_0 = arith.constant 0 : i32
    %c0_i32_1 = arith.constant 0 : i32
    return %arg0, %c0_i32, %c0_i32_0 : i32, i32, i32
  }
  func.func @transform_2(%arg0: i32) -> (i32, i32, i32) {
    %c0_i32 = arith.constant 0 : i32
    %c0_i32_0 = arith.constant 0 : i32
    %c0_i32_1 = arith.constant 0 : i32
    return %arg0, %c0_i32, %c0_i32_0 : i32, i32, i32
  }
  func.func @transform_3(%arg0: i32) -> (i32, i32, i32) {
    %c0_i32 = arith.constant 0 : i32
    %c0_i32_0 = arith.constant 0 : i32
    %c0_i32_1 = arith.constant 0 : i32
    return %arg0, %c0_i32, %c0_i32_0 : i32, i32, i32
  }
  func.func @transform_4(%arg0: i32) -> (i32, i32) {
    %c0_i32 = arith.constant 0 : i32
    %c0_i32_0 = arith.constant 0 : i32
    %c0_i32_1 = arith.constant 0 : i32
    return %c0_i32, %c0_i32_0 : i32, i32
  }
  func.func @transform_5(%arg0: i32) -> (i32, i32) {
    %c0_i32 = arith.constant 0 : i32
    %c0_i32_0 = arith.constant 0 : i32
    %c0_i32_1 = arith.constant 0 : i32
    return %c0_i32, %c0_i32_0 : i32, i32
  }
  func.func @transform_6(%arg0: i32) -> (i32, i32, i32) {
    %c0_i32 = arith.constant 0 : i32
    %c0_i32_0 = arith.constant 0 : i32
    %c0_i32_1 = arith.constant 0 : i32
    return %arg0, %c0_i32, %c0_i32_0 : i32, i32, i32
  }
}

</mosaic_0001>

<llo_original>
// kernel: tpu_custom_call.1
$region0: #{tpu_custom_call.1}
  #allocation0 [shape = 'u32[]', space=smem, size = 0x4, offset = 0x4, fixed_abs, tag = 'smem constant byte address 0x4 - core index']
  #allocation1 [shape = 'u32[72,128]{1,0:T(1,128)}', space=vmem, size = 0x9000, scoped, tag = 'internal scratch']
  #allocation2 [shape = 'f32[1,1]{1,0:T(1,128)S(6)}', space=smem, size = 0x200, scoped, tag = 'scoped memory for tpu_custom_call.1']
  %s0 = inlined_call_operand.vmem [shape: bf16[4,32,128], index: 0, kind: input, shape index: {}]
  %s1 = inlined_call_operand.vmem [shape: bf16[4,32,128], index: 1, kind: input, shape index: {}]
  %s2 = inlined_call_operand.vmem [shape: f32[4,1,128], index: 2, kind: input, shape index: {}]
  %s3 = inlined_call_operand.vmem [shape: f32[4,128,1], index: 3, kind: input, shape index: {}]
  %s4 = inlined_call_operand.vmem [shape: f32[32,8], index: 4, kind: input, shape index: {}]
  %s5 = inlined_call_operand.<no memory space> [shape: f32[1,1], index: 5, kind: input, shape index: {}]
  %s6 = inlined_call_operand.hbm [shape: bf16[4,128,128], index: 6, kind: output, shape index: {}]
  %s7 = sld [smem:[#allocation0]]
  $region57: #{tpu_custom_call.1} parent=0
    _
  %s9 = ssub.s32 1, %s7
  %s10 = scalar_select 0, %s9, %s7
  %11 = sst [smem:[#allocation2]] %s5
  $region1: #{tpu_custom_call.1} parent=0
    #allocation3 [shape = 'u8[65536]{0}', space=vmem, size = 0x10000, scoped, tag = 'output window, operand 0']
    #allocation4 [shape = 's32[2]{0}', space=sflag, size = 0x8, scoped, tag = 'scoped memory for tpu_custom_call.1']
    %12 = vsyncpa [#allocation4], 0
    %s13 = scalar_lea.sflag [#allocation4], 1
    %14 = vsyncpa %s13, 0
    loop: start=0, step=1, limit=6
    $region2: #{tpu_custom_call.1} parent=1 // loop_pre_header
      _
    $region3: #{tpu_custom_call.1} parent=1 // loop_header
      %s16 = sphi 0, %s20
      %p17 = scmp.ge.s32.totalorder %s16, 6
      %s26 = sphi 0, %s28
      %s29 = sphi 0, %s26
      %s30 = sphi 0, %s29
      %s46 = sphi 0, %s30
      %s52 = sphi 0, %s54
      %s55 = sphi 0, %s52
      %s56 = sphi 0, %s55
      %s72 = sphi 0, %s56
      %s78 = sphi 0, %s80
      %s81 = sphi 0, %s78
      %s82 = sphi 0, %s81
      %s98 = sphi 0, %s82
      %s104 = sphi 0, %s106
      %s107 = sphi 0, %s104
      %s108 = sphi 0, %s107
      %s124 = sphi 0, %s108
      %s128 = sphi 0, %s128
      %s130 = sphi 0, %s128
      %s131 = sphi 0, %s130
      %s145 = sphi 0, %s131
      %s149 = sphi 0, %s149
      %s151 = sphi 0, %s149
      %s152 = sphi 0, %s151
      %s166 = sphi 0, %s152
      %s172 = sphi 0, %s174
      %s175 = sphi 0, %s172
      %s176 = sphi 0, %s175
      %s192 = sphi 0, %s176
    $region4: #{tpu_custom_call.1} parent=1 // loop_header_branch
      %19 = sbr.rel (%p17) target = $region8
    $region5: #{tpu_custom_call.1} parent=1 // loop_body
      %s21 = ssub.s32 %s16, 1
      %s22 = ssub.s32 %s16, 2
      %s23 = sadd.s32 %s16, 1
      %s24 = ssub.s32 %s16, %s23
      %p25 = scmp.eq.s32.totalorder %s24, 0
      %s27 = sadd.s32 %s26, 1
      %s28 = scalar_select %p25, %s26, %s27
      %p31 = pneg %p25
      %p32 = scmp.eq.s32.totalorder %s16, 3
      %p33 = por %p31, %p32
      %p34 = scmp.ne.s32.totalorder %s26, %s29
      %p35 = scmp.eq.s32.totalorder %s16, 0
      %p36 = por %p34, %p35
      %p37 = scmp.ne.s32.totalorder %s26, %s29
      %p38 = scmp.eq.s32.totalorder %s21, 3
      %p39 = por %p37, %p38
      %p40 = scmp.ne.s32.totalorder %s29, %s30
      %p41 = scmp.eq.s32.totalorder %s21, 0
      %p42 = por %p40, %p41
      %p43 = scmp.ne.s32.totalorder %s29, %s30
      %p44 = scmp.eq.s32.totalorder %s22, 3
      %p45 = por %p43, %p44
      %p47 = scmp.ne.s32.totalorder %s30, %s46
      %p48 = scmp.eq.s32.totalorder %s22, 0
      %p49 = por %p47, %p48
      %s50 = ssub.s32 %s16, %s23
      %p51 = scmp.eq.s32.totalorder %s50, 0
      %s53 = sadd.s32 %s52, 1
      %s54 = scalar_select %p51, %s52, %s53
      %p57 = pneg %p51
      %p58 = scmp.eq.s32.totalorder %s16, 3
      %p59 = por %p57, %p58
      %p60 = scmp.ne.s32.totalorder %s52, %s55
      %p61 = scmp.eq.s32.totalorder %s16, 0
      %p62 = por %p60, %p61
      %p63 = scmp.ne.s32.totalorder %s52, %s55
      %p64 = scmp.eq.s32.totalorder %s21, 3
      %p65 = por %p63, %p64
      %p66 = scmp.ne.s32.totalorder %s55, %s56
      %p67 = scmp.eq.s32.totalorder %s21, 0
      %p68 = por %p66, %p67
      %p69 = scmp.ne.s32.totalorder %s55, %s56
      %p70 = scmp.eq.s32.totalorder %s22, 3
      %p71 = por %p69, %p70
      %p73 = scmp.ne.s32.totalorder %s56, %s72
      %p74 = scmp.eq.s32.totalorder %s22, 0
      %p75 = por %p73, %p74
      %s76 = ssub.s32 %s16, %s23
      %p77 = scmp.eq.s32.totalorder %s76, 0
      %s79 = sadd.s32 %s78, 1
      %s80 = scalar_select %p77, %s78, %s79
      %p83 = pneg %p77
      %p84 = scmp.eq.s32.totalorder %s16, 3
      %p85 = por %p83, %p84
      %p86 = scmp.ne.s32.totalorder %s78, %s81
      %p87 = scmp.eq.s32.totalorder %s16, 0
      %p88 = por %p86, %p87
      %p89 = scmp.ne.s32.totalorder %s78, %s81
      %p90 = scmp.eq.s32.totalorder %s21, 3
      %p91 = por %p89, %p90
      %p92 = scmp.ne.s32.totalorder %s81, %s82
      %p93 = scmp.eq.s32.totalorder %s21, 0
      %p94 = por %p92, %p93
      %p95 = scmp.ne.s32.totalorder %s81, %s82
      %p96 = scmp.eq.s32.totalorder %s22, 3
      %p97 = por %p95, %p96
      %p99 = scmp.ne.s32.totalorder %s82, %s98
      %p100 = scmp.eq.s32.totalorder %s22, 0
      %p101 = por %p99, %p100
      %s102 = ssub.s32 %s16, %s23
      %p103 = scmp.eq.s32.totalorder %s102, 0
      %s105 = sadd.s32 %s104, 1
      %s106 = scalar_select %p103, %s104, %s105
      %p109 = pneg %p103
      %p110 = scmp.eq.s32.totalorder %s16, 3
      %p111 = por %p109, %p110
      %p112 = scmp.ne.s32.totalorder %s104, %s107
      %p113 = scmp.eq.s32.totalorder %s16, 0
      %p114 = por %p112, %p113
      %p115 = scmp.ne.s32.totalorder %s104, %s107
      %p116 = scmp.eq.s32.totalorder %s21, 3
      %p117 = por %p115, %p116
      %p118 = scmp.ne.s32.totalorder %s107, %s108
      %p119 = scmp.eq.s32.totalorder %s21, 0
      %p120 = por %p118, %p119
      %p121 = scmp.ne.s32.totalorder %s107, %s108
      %p122 = scmp.eq.s32.totalorder %s22, 3
      %p123 = por %p121, %p122
      %p125 = scmp.ne.s32.totalorder %s108, %s124
      %p126 = scmp.eq.s32.totalorder %s22, 0
      %p127 = por %p125, %p126
      %s129 = sadd.s32 %s128, 1
      %p132 = scmp.eq.s32.totalorder %s16, 3
      %p133 = scmp.ne.s32.totalorder %s128, %s130
      %p134 = scmp.eq.s32.totalorder %s16, 0
      %p135 = por %p133, %p134
      %p136 = scmp.ne.s32.totalorder %s128, %s130
      %p137 = scmp.eq.s32.totalorder %s21, 3
      %p138 = por %p136, %p137
      %p139 = scmp.ne.s32.totalorder %s130, %s131
      %p140 = scmp.eq.s32.totalorder %s21, 0
      %p141 = por %p139, %p140
      %p142 = scmp.ne.s32.totalorder %s130, %s131
      %p143 = scmp.eq.s32.totalorder %s22, 3
      %p144 = por %p142, %p143
      %p146 = scmp.ne.s32.totalorder %s131, %s145
      %p147 = scmp.eq.s32.totalorder %s22, 0
      %p148 = por %p146, %p147
      %s150 = sadd.s32 %s149, 1
      %p153 = scmp.eq.s32.totalorder %s16, 3
      %p154 = scmp.ne.s32.totalorder %s149, %s151
      %p155 = scmp.eq.s32.totalorder %s16, 0
      %p156 = por %p154, %p155
      %p157 = scmp.ne.s32.totalorder %s149, %s151
      %p158 = scmp.eq.s32.totalorder %s21, 3
      %p159 = por %p157, %p158
      %p160 = scmp.ne.s32.totalorder %s151, %s152
      %p161 = scmp.eq.s32.totalorder %s21, 0
      %p162 = por %p160, %p161
      %p163 = scmp.ne.s32.totalorder %s151, %s152
      %p164 = scmp.eq.s32.totalorder %s22, 3
      %p165 = por %p163, %p164
      %p167 = scmp.ne.s32.totalorder %s152, %s166
      %p168 = scmp.eq.s32.totalorder %s22, 0
      %p169 = por %p167, %p168
      %s170 = ssub.s32 %s16, %s23
      %p171 = scmp.eq.s32.totalorder %s170, 0
      %s173 = sadd.s32 %s172, 1
      %s174 = scalar_select %p171, %s172, %s173
      %p177 = pneg %p171
      %p178 = scmp.eq.s32.totalorder %s16, 3
      %p179 = por %p177, %p178
      %p180 = scmp.ne.s32.totalorder %s172, %s175
      %p181 = scmp.eq.s32.totalorder %s16, 0
      %p182 = por %p180, %p181
      %p183 = scmp.ne.s32.totalorder %s172, %s175
      %p184 = scmp.eq.s32.totalorder %s21, 3
      %p185 = por %p183, %p184
      %p186 = scmp.ne.s32.totalorder %s175, %s176
      %p187 = scmp.eq.s32.totalorder %s21, 0
      %p188 = por %p186, %p187
      %p189 = scmp.ne.s32.totalorder %s175, %s176
      %p190 = scmp.eq.s32.totalorder %s22, 3
      %p191 = por %p189, %p190
      %p193 = scmp.ne.s32.totalorder %s176, %s192
      %p194 = scmp.eq.s32.totalorder %s22, 0
      %p195 = por %p193, %p194
      %p196 = scmp.le.s32.totalorder 1, %s16
      %p197 = scmp.lt.s32.totalorder %s16, 5
      %p198 = pnand %p196, %p197
      %p199 = pneg %p198
      // Predicated region
      $region9: #{tpu_custom_call.1} parent=5 // pred_check
        _
      $region10: #{tpu_custom_call.1} parent=5 // pred_check_branch
        %201 = sbr.rel (%p198) target = $region12
      $region11: #{tpu_custom_call.1} parent=5 // pred_region
        %s202 = ssub.s32 %s16, 1
        // Predicated region
        $region13: #{tpu_custom_call.1} parent=11 // pred_check
          %p203 = pneg %p141
        $region14: #{tpu_custom_call.1} parent=11 // pred_check_branch
          %205 = sbr.rel (%p203) target = $region16
        $region15: #{tpu_custom_call.1} parent=11 // pred_region
          _
        $region16: #{tpu_custom_call.1} parent=11 // pred_fallthru
          _
        // Predicated region
        $region17: #{tpu_custom_call.1} parent=11 // pred_check
          %p206 = pneg %p162
        $region18: #{tpu_custom_call.1} parent=11 // pred_check_branch
          %208 = sbr.rel (%p206) target = $region20
        $region19: #{tpu_custom_call.1} parent=11 // pred_region
          _
        $region20: #{tpu_custom_call.1} parent=11 // pred_fallthru
          _
      $region12: #{tpu_custom_call.1} parent=5 // pred_fallthru
        _
      %p209 = scmp.lt.s32.totalorder %s16, 4
      // Predicated region
      $region21: #{tpu_custom_call.1} parent=5 // pred_check
        %p210 = pneg %p209
      $region22: #{tpu_custom_call.1} parent=5 // pred_check_branch
        %212 = sbr.rel (%p210) target = $region24
      $region23: #{tpu_custom_call.1} parent=5 // pred_region
        // Predicated region
        $region25: #{tpu_custom_call.1} parent=23 // pred_check
          %p213 = pneg %p36
        $region26: #{tpu_custom_call.1} parent=23 // pred_check_branch
          %215 = sbr.rel (%p213) target = $region28
        $region27: #{tpu_custom_call.1} parent=23 // pred_region
          %p216 = scmp.lt.s32.totalorder %s16, 3
          %s217 = scalar_select %p216, %s16, 3
          %s218 = smul.addr %s217, 4
          %s219 = smul.addr %s218, 4
          %s220 = scalar_lea.vmem %s0, %s219
        $region28: #{tpu_custom_call.1} parent=23 // pred_fallthru
          _
        // Predicated region
        $region29: #{tpu_custom_call.1} parent=23 // pred_check
          %p221 = pneg %p62
        $region30: #{tpu_custom_call.1} parent=23 // pred_check_branch
          %223 = sbr.rel (%p221) target = $region32
        $region31: #{tpu_custom_call.1} parent=23 // pred_region
          %p224 = scmp.lt.s32.totalorder %s16, 3
          %s225 = scalar_select %p224, %s16, 3
          %s226 = smul.addr %s225, 4
          %s227 = smul.addr %s226, 4
          %s228 = scalar_lea.vmem %s1, %s227
        $region32: #{tpu_custom_call.1} parent=23 // pred_fallthru
          _
        // Predicated region
        $region33: #{tpu_custom_call.1} parent=23 // pred_check
          %p229 = pneg %p88
        $region34: #{tpu_custom_call.1} parent=23 // pred_check_branch
          %231 = sbr.rel (%p229) target = $region36
        $region35: #{tpu_custom_call.1} parent=23 // pred_region
          %p232 = scmp.lt.s32.totalorder %s16, 3
          %s233 = scalar_select %p232, %s16, 3
          %s234 = scalar_lea.vmem %s2, %s233
        $region36: #{tpu_custom_call.1} parent=23 // pred_fallthru
          _
        // Predicated region
        $region37: #{tpu_custom_call.1} parent=23 // pred_check
          %p235 = pneg %p114
        $region38: #{tpu_custom_call.1} parent=23 // pred_check_branch
          %237 = sbr.rel (%p235) target = $region40
        $region39: #{tpu_custom_call.1} parent=23 // pred_region
          %p238 = scmp.lt.s32.totalorder %s16, 3
          %s239 = scalar_select %p238, %s16, 3
          %s240 = smul.addr %s239, 16
          %s241 = smul.addr %s240, 8
          %s242 = scalar_lea.vmem %s3, %s241
        $region40: #{tpu_custom_call.1} parent=23 // pred_fallthru
          _
      $region24: #{tpu_custom_call.1} parent=5 // pred_fallthru
        _
      %p243 = scmp.le.s32.totalorder 1, %s16
      %p244 = scmp.lt.s32.totalorder %s16, 5
      %p245 = pnand %p243, %p244
      %p246 = pneg %p245
      // Predicated region
      $region41: #{tpu_custom_call.1} parent=5 // pred_check
        _
      $region42: #{tpu_custom_call.1} parent=5 // pred_check_branch
        %248 = sbr.rel (%p245) target = $region44
      $region43: #{tpu_custom_call.1} parent=5 // pred_region
        %s249 = ssub.s32 %s16, 1
        %p250 = scmp.lt.s32.totalorder %s21, 3
        %s251 = scalar_select %p250, %s21, 3
        %s252 = smul.addr %s251, 4
        %s253 = smul.addr %s252, 4
        %s254 = scalar_lea.vmem %s0, %s253
        %p255 = pneg %p42
        %p256 = pneg %p39
        %p257 = scmp.lt.s32.totalorder %s21, 3
        %s258 = scalar_select %p257, %s21, 3
        %s259 = smul.addr %s258, 4
        %s260 = smul.addr %s259, 4
        %s261 = scalar_lea.vmem %s1, %s260
        %p262 = pneg %p68
        %p263 = pneg %p65
        %p264 = scmp.lt.s32.totalorder %s21, 3
        %s265 = scalar_select %p264, %s21, 3
        %s266 = scalar_lea.vmem %s2, %s265
        %p267 = pneg %p94
        %p268 = pneg %p91
        %p269 = scmp.lt.s32.totalorder %s21, 3
        %s270 = scalar_select %p269, %s21, 3
        %s271 = smul.addr %s270, 16
        %s272 = smul.addr %s271, 8
        %s273 = scalar_lea.vmem %s3, %s272
        %p274 = pneg %p120
        %p275 = pneg %p117
        %p276 = pneg %p141
        %p277 = pneg %p138
        %p278 = pneg %p162
        %p279 = pneg %p159
        %p280 = pneg %p188
        %p281 = pneg %p185
        %s282 = sand.u32 %s175, 1
        %s283 = scalar_lea.sflag [#allocation4], %s282
        %s284 = sand.u32 %s175, 1
        %s285 = smul.addr %s284, 64
        %s286 = scalar_lea.vmem [#allocation3], %s285
        %p287 = scmp.lt.s32.totalorder %s21, 3
        %s288 = scalar_select %p287, %s21, 3
        %s289 = smul.addr %s288, 4
        %s290 = smul.addr %s289, 4
        %s291 = scalar_lea.vmem %s0, %s290
        %p292 = scmp.lt.s32.totalorder %s21, 3
        %s293 = scalar_select %p292, %s21, 3
        %s294 = smul.addr %s293, 4
        %s295 = smul.addr %s294, 4
        %s296 = scalar_lea.vmem %s1, %s295
        %p297 = scmp.lt.s32.totalorder %s21, 3
        %s298 = scalar_select %p297, %s21, 3
        %s299 = scalar_lea.vmem %s2, %s298
        %p300 = scmp.lt.s32.totalorder %s21, 3
        %s301 = scalar_select %p300, %s21, 3
        %s302 = smul.addr %s301, 16
        %s303 = smul.addr %s302, 8
        %s304 = scalar_lea.vmem %s3, %s303
        %v306 = vld [vmem:[%s4] sm:$0xff]
        %v307 = vld [vmem:[%s4 + $0x8] sm:$0xff]
        %v308 = vld [vmem:[%s4 + $0x10] sm:$0xff]
        %v309 = vld [vmem:[%s4 + $0x18] sm:$0xff]
        %s310 = sld [smem:[#allocation2]]
        %v311 = vld [vmem:[%s291] sm:$0xf]
        %v312 = vld [vmem:[%s291 + $0x4] sm:$0xf]
        %v313 = vld [vmem:[%s291 + $0x8] sm:$0xf]
        %v314 = vld [vmem:[%s291 + $0xc] sm:$0xf]
        %v315 = vld [vmem:[%s296] sm:$0xf]
        %v316 = vld [vmem:[%s296 + $0x4] sm:$0xf]
        %v317 = vld [vmem:[%s296 + $0x8] sm:$0xf]
        %v318 = vld [vmem:[%s296 + $0xc] sm:$0xf]
        %v319 = vld [vmem:[%s299] sm:$0x1]
        %v320 = vld [vmem:[%s304] sm:$0xff]
        %v321 = vld [vmem:[%s304 + $0x8] sm:$0xff]
        %v322 = vld [vmem:[%s304 + $0x10] sm:$0xff]
        %v323 = vld [vmem:[%s304 + $0x18] sm:$0xff]
        %v324 = vld [vmem:[%s304 + $0x20] sm:$0xff]
        %v325 = vld [vmem:[%s304 + $0x28] sm:$0xff]
        %v326 = vld [vmem:[%s304 + $0x30] sm:$0xff]
        %v327 = vld [vmem:[%s304 + $0x38] sm:$0xff]
        %v328 = vld [vmem:[%s304 + $0x40] sm:$0xff]
        %v329 = vld [vmem:[%s304 + $0x48] sm:$0xff]
        %v330 = vld [vmem:[%s304 + $0x50] sm:$0xff]
        %v331 = vld [vmem:[%s304 + $0x58] sm:$0xff]
        %v332 = vld [vmem:[%s304 + $0x60] sm:$0xff]
        %v333 = vld [vmem:[%s304 + $0x68] sm:$0xff]
        %v334 = vld [vmem:[%s304 + $0x70] sm:$0xff]
        %v335 = vld [vmem:[%s304 + $0x78] sm:$0xff]
        %v336 = vunpack.c.l.bf16 %v311
        %v337 = vunpack.c.l.bf16 %v312
        %v338 = vunpack.c.l.bf16 %v313
        %v339 = vunpack.c.l.bf16 %v314
        %341 = vset.pattern.permute.xlu0 0
        %342 = vperm.xlu0 %341, %v306
        %v343 = vpop.permute.xlu0 %342
        %346 = vset.pattern.permute.xlu0 0
        %347 = vperm.xlu0 %346, %v307
        %v348 = vpop.permute.xlu0 %347
        %351 = vset.pattern.permute.xlu0 0
        %352 = vperm.xlu0 %351, %v308
        %v353 = vpop.permute.xlu0 %352
        %356 = vset.pattern.permute.xlu0 0
        %357 = vperm.xlu0 %356, %v309
        %v358 = vpop.permute.xlu0 %357
        %v360 = vmul.f32 %v336, %v343
        %v361 = vmul.f32 %v337, %v348
        %v362 = vmul.f32 %v338, %v353
        %v363 = vmul.f32 %v339, %v358
        %v364 = vadd.f32 %v360, %v361
        %v365 = vadd.f32 %v364, %v362
        %v366 = vadd.f32 %v365, %v363
        %v367 = vrot.slane %v366, 4
        %v368 = vadd.f32 %v366, %v367
        %v369 = vrot.slane %v368, 2
        %v370 = vadd.f32 %v368, %v369
        %v371 = vrot.slane %v370, 1
        %v372 = vadd.f32 %v370, %v371
        %373 = vset.pattern.permute.xlu0 2
        %374 = vperm.xlu0 %373, %v306
        %v375 = vpop.permute.xlu0 %374
        %377 = vset.pattern.permute.xlu0 2
        %378 = vperm.xlu0 %377, %v307
        %v379 = vpop.permute.xlu0 %378
        %381 = vset.pattern.permute.xlu0 2
        %382 = vperm.xlu0 %381, %v308
        %v383 = vpop.permute.xlu0 %382
        %385 = vset.pattern.permute.xlu0 2
        %386 = vperm.xlu0 %385, %v309
        %v387 = vpop.permute.xlu0 %386
        %v389 = vmul.f32 %v336, %v375
        %v390 = vmul.f32 %v337, %v379
        %v391 = vmul.f32 %v338, %v383
        %v392 = vmul.f32 %v339, %v387
        %393 = vset.pattern.permute.xlu0 1
        %394 = vperm.xlu0 %393, %v306
        %v395 = vpop.permute.xlu0 %394
        %397 = vset.pattern.permute.xlu0 1
        %398 = vperm.xlu0 %397, %v307
        %v399 = vpop.permute.xlu0 %398
        %401 = vset.pattern.permute.xlu0 1
        %402 = vperm.xlu0 %401, %v308
        %v403 = vpop.permute.xlu0 %402
        %405 = vset.pattern.permute.xlu0 1
        %406 = vperm.xlu0 %405, %v309
        %v407 = vpop.permute.xlu0 %406
        %v409 = vadd.f32 %v389, %v395
        %v410 = vadd.f32 %v390, %v399
        %v411 = vadd.f32 %v391, %v403
        %v412 = vadd.f32 %v392, %v407
        %v413 = vpack.c.bf16 %v410, %v409
        %v414 = vpack.c.bf16 %v412, %v411
        %v419 = vunpack.c.l.b16 %v315
        %v420 = vunpack.c.l.b16 %v316
        %v421 = vunpack.c.l.b16 %v317
        %v422 = vunpack.c.l.b16 %v318
        %v423 = vpack.c.b16 %v420, %v419
        %v424 = vpack.c.b16 %v422, %v421
        %427 = vxpose.xlu0.c.b16.start [1/8] %v423, 128
        %428 = vxpose.xlu0.c.b16.cont [2/8] %v424, 128
        %429 = vxpose.xlu0.c.b16.cont [3/8] 0, 128
        %430 = vxpose.xlu0.c.b16.cont [4/8] 0, 128
        %431 = vxpose.xlu0.c.b16.cont [5/8] 0, 128
        %432 = vxpose.xlu0.c.b16.cont [6/8] 0, 128
        %433 = vxpose.xlu0.c.b16.cont [7/8] 0, 128
        %434 = vxpose.xlu0.c.b16.end [8/8] 0, 128
        %v435 = vpop.trf.xlu0
        %v436 = vpop.trf.xlu0
        %v437 = vpop.trf.xlu0
        %v438 = vpop.trf.xlu0
        %v439 = vpop.trf.xlu0
        %v440 = vpop.trf.xlu0
        %v441 = vpop.trf.xlu0
        %v442 = vpop.trf.xlu0
        %vm443 = vcmask 261120
        %v445 = vsel %vm443, %v435, 0
        %v448 = vsel %vm443, %v436, 0
        %v451 = vsel %vm443, %v437, 0
        %v454 = vsel %vm443, %v438, 0
        %v457 = vsel %vm443, %v439, 0
        %v460 = vsel %vm443, %v440, 0
        %v463 = vsel %vm443, %v441, 0
        %v466 = vsel %vm443, %v442, 0
        %468 = vmatpush.bf16.msra.mxu0 0
        %469 = vmatpush.bf16.msra.mxu0 0
        %470 = vmatpush.bf16.msra.mxu0 0
        %471 = vmatpush.bf16.msra.mxu0 0
        %472 = vmatpush.bf16.msra.mxu0 0
        %473 = vmatpush.bf16.msra.mxu0 0
        %474 = vmatpush.bf16.msra.mxu0 %v414
        %475 = vmatpush.bf16.msra.mxu0 %v413
        %476 = vmatmul.bf16.gmra.mxu0 %v445
        %v477 = vpop.f32.mrf.mxu0
        %v478 = vadd.f32 %v372, %v477
        %v479 = vpop.f32.mrf.mxu0
        %v480 = vadd.f32 %v372, %v479
        %481 = vmatmul.bf16.gmra.mxu0 %v448
        %v482 = vpop.f32.mrf.mxu0
        %v483 = vadd.f32 %v372, %v482
        %v484 = vpop.f32.mrf.mxu0
        %v485 = vadd.f32 %v372, %v484
        %486 = vmatmul.bf16.gmra.mxu0 %v451
        %v487 = vpop.f32.mrf.mxu0
        %v488 = vadd.f32 %v372, %v487
        %v489 = vpop.f32.mrf.mxu0
        %v490 = vadd.f32 %v372, %v489
        %491 = vmatmul.bf16.gmra.mxu0 %v454
        %v492 = vpop.f32.mrf.mxu0
        %v493 = vadd.f32 %v372, %v492
        %v494 = vpop.f32.mrf.mxu0
        %v495 = vadd.f32 %v372, %v494
        %496 = vmatmul.bf16.gmra.mxu0 %v457
        %v497 = vpop.f32.mrf.mxu0
        %v498 = vadd.f32 %v372, %v497
        %v499 = vpop.f32.mrf.mxu0
        %v500 = vadd.f32 %v372, %v499
        %501 = vmatmul.bf16.gmra.mxu0 %v460
        %v502 = vpop.f32.mrf.mxu0
        %v503 = vadd.f32 %v372, %v502
        %v504 = vpop.f32.mrf.mxu0
        %v505 = vadd.f32 %v372, %v504
        %506 = vmatmul.bf16.gmra.mxu0 %v463
        %v507 = vpop.f32.mrf.mxu0
        %v508 = vadd.f32 %v372, %v507
        %v509 = vpop.f32.mrf.mxu0
        %v510 = vadd.f32 %v372, %v509
        %511 = vmatmul.bf16.gmra.mxu0 %v466
        %v512 = vpop.f32.mrf.mxu0
        %v513 = vadd.f32 %v372, %v512
        %v514 = vpop.f32.mrf.mxu0
        %v515 = vadd.f32 %v372, %v514
        %516 = vdwg.mxu0
        %v517 = vstv %s310
        %v518 = vadd.f32 %v478, %v517
        %v519 = vadd.f32 %v480, %v517
        %v520 = vadd.f32 %v483, %v517
        %v521 = vadd.f32 %v485, %v517
        %v522 = vadd.f32 %v488, %v517
        %v523 = vadd.f32 %v490, %v517
        %v524 = vadd.f32 %v493, %v517
        %v525 = vadd.f32 %v495, %v517
        %v526 = vadd.f32 %v498, %v517
        %v527 = vadd.f32 %v500, %v517
        %v528 = vadd.f32 %v503, %v517
        %v529 = vadd.f32 %v505, %v517
        %v530 = vadd.f32 %v508, %v517
        %v531 = vadd.f32 %v510, %v517
        %v532 = vadd.f32 %v513, %v517
        %v533 = vadd.f32 %v515, %v517
        %535 = vset.pattern.permute.xlu0 0
        %536 = vperm.xlu0 %535, %v320
        %v537 = vpop.permute.xlu0 %536
        %540 = vset.pattern.permute.xlu0 0
        %541 = vperm.xlu0 %540, %v321
        %v542 = vpop.permute.xlu0 %541
        %545 = vset.pattern.permute.xlu0 0
        %546 = vperm.xlu0 %545, %v322
        %v547 = vpop.permute.xlu0 %546
        %550 = vset.pattern.permute.xlu0 0
        %551 = vperm.xlu0 %550, %v323
        %v552 = vpop.permute.xlu0 %551
        %555 = vset.pattern.permute.xlu0 0
        %556 = vperm.xlu0 %555, %v324
        %v557 = vpop.permute.xlu0 %556
        %560 = vset.pattern.permute.xlu0 0
        %561 = vperm.xlu0 %560, %v325
        %v562 = vpop.permute.xlu0 %561
        %565 = vset.pattern.permute.xlu0 0
        %566 = vperm.xlu0 %565, %v326
        %v567 = vpop.permute.xlu0 %566
        %570 = vset.pattern.permute.xlu0 0
        %571 = vperm.xlu0 %570, %v327
        %v572 = vpop.permute.xlu0 %571
        %575 = vset.pattern.permute.xlu0 0
        %576 = vperm.xlu0 %575, %v328
        %v577 = vpop.permute.xlu0 %576
        %580 = vset.pattern.permute.xlu0 0
        %581 = vperm.xlu0 %580, %v329
        %v582 = vpop.permute.xlu0 %581
        %585 = vset.pattern.permute.xlu0 0
        %586 = vperm.xlu0 %585, %v330
        %v587 = vpop.permute.xlu0 %586
        %590 = vset.pattern.permute.xlu0 0
        %591 = vperm.xlu0 %590, %v331
        %v592 = vpop.permute.xlu0 %591
        %595 = vset.pattern.permute.xlu0 0
        %596 = vperm.xlu0 %595, %v332
        %v597 = vpop.permute.xlu0 %596
        %600 = vset.pattern.permute.xlu0 0
        %601 = vperm.xlu0 %600, %v333
        %v602 = vpop.permute.xlu0 %601
        %605 = vset.pattern.permute.xlu0 0
        %606 = vperm.xlu0 %605, %v334
        %v607 = vpop.permute.xlu0 %606
        %610 = vset.pattern.permute.xlu0 0
        %611 = vperm.xlu0 %610, %v335
        %v612 = vpop.permute.xlu0 %611
        %v614 = vadd.f32 %v518, %v537
        %v615 = vadd.f32 %v519, %v542
        %v616 = vadd.f32 %v520, %v547
        %v617 = vadd.f32 %v521, %v552
        %v618 = vadd.f32 %v522, %v557
        %v619 = vadd.f32 %v523, %v562
        %v620 = vadd.f32 %v524, %v567
        %v621 = vadd.f32 %v525, %v572
        %v622 = vadd.f32 %v526, %v577
        %v623 = vadd.f32 %v527, %v582
        %v624 = vadd.f32 %v528, %v587
        %v625 = vadd.f32 %v529, %v592
        %v626 = vadd.f32 %v530, %v597
        %v627 = vadd.f32 %v531, %v602
        %v628 = vadd.f32 %v532, %v607
        %v629 = vadd.f32 %v533, %v612
        %v631 = vperm.slane %v319, 0
        %v633 = vadd.f32 %v518, %v631
        %v634 = vadd.f32 %v519, %v631
        %v635 = vadd.f32 %v520, %v631
        %v636 = vadd.f32 %v521, %v631
        %v637 = vadd.f32 %v522, %v631
        %v638 = vadd.f32 %v523, %v631
        %v639 = vadd.f32 %v524, %v631
        %v640 = vadd.f32 %v525, %v631
        %v641 = vadd.f32 %v526, %v631
        %v642 = vadd.f32 %v527, %v631
        %v643 = vadd.f32 %v528, %v631
        %v644 = vadd.f32 %v529, %v631
        %v645 = vadd.f32 %v530, %v631
        %v646 = vadd.f32 %v531, %v631
        %v647 = vadd.f32 %v532, %v631
        %v648 = vadd.f32 %v533, %v631
        %v649 = vmax.f32 %v614, %v618
        %v650 = vmax.f32 %v615, %v619
        %v651 = vmax.f32 %v616, %v620
        %v652 = vmax.f32 %v617, %v621
        %v653 = vmax.f32 %v649, %v622
        %v654 = vmax.f32 %v650, %v623
        %v655 = vmax.f32 %v651, %v624
        %v656 = vmax.f32 %v652, %v625
        %v657 = vmax.f32 %v653, %v626
        %v658 = vmax.f32 %v654, %v627
        %v659 = vmax.f32 %v655, %v628
        %v660 = vmax.f32 %v656, %v629
        %v661 = vmax.f32 %v657, %v658
        %v662 = vmax.f32 %v659, %v660
        %v663 = vmax.f32 %v661, %v662
        %v664 = vrot.slane %v663, 4
        %v665 = vmax.f32 %v663, %v664
        %v666 = vrot.slane %v665, 2
        %v667 = vmax.f32 %v665, %v666
        %v668 = vrot.slane %v667, 1
        %v669 = vmax.f32 %v667, %v668
        %v670 = vsub.f32 %v614, %v669
        %v671 = vsub.f32 %v615, %v669
        %v672 = vsub.f32 %v616, %v669
        %v673 = vsub.f32 %v617, %v669
        %v674 = vsub.f32 %v618, %v669
        %v675 = vsub.f32 %v619, %v669
        %v676 = vsub.f32 %v620, %v669
        %v677 = vsub.f32 %v621, %v669
        %v678 = vsub.f32 %v622, %v669
        %v679 = vsub.f32 %v623, %v669
        %v680 = vsub.f32 %v624, %v669
        %v681 = vsub.f32 %v625, %v669
        %v682 = vsub.f32 %v626, %v669
        %v683 = vsub.f32 %v627, %v669
        %v684 = vsub.f32 %v628, %v669
        %v685 = vsub.f32 %v629, %v669
        %v686 = vmul.f32 %v670, 1.442695
        %v687 = vpow.pop %v686
        %v688 = vmul.f32 %v671, 1.442695
        %v689 = vpow.pop %v688
        %v690 = vmul.f32 %v672, 1.442695
        %v691 = vpow.pop %v690
        %v692 = vmul.f32 %v673, 1.442695
        %v693 = vpow.pop %v692
        %v694 = vmul.f32 %v674, 1.442695
        %v695 = vpow.pop %v694
        %v696 = vmul.f32 %v675, 1.442695
        %v697 = vpow.pop %v696
        %v698 = vmul.f32 %v676, 1.442695
        %v699 = vpow.pop %v698
        %v700 = vmul.f32 %v677, 1.442695
        %v701 = vpow.pop %v700
        %v702 = vmul.f32 %v678, 1.442695
        %v703 = vpow.pop %v702
        %v704 = vmul.f32 %v679, 1.442695
        %v705 = vpow.pop %v704
        %v706 = vmul.f32 %v680, 1.442695
        %v707 = vpow.pop %v706
        %v708 = vmul.f32 %v681, 1.442695
        %v709 = vpow.pop %v708
        %v710 = vmul.f32 %v682, 1.442695
        %v711 = vpow.pop %v710
        %v712 = vmul.f32 %v683, 1.442695
        %v713 = vpow.pop %v712
        %v714 = vmul.f32 %v684, 1.442695
        %v715 = vpow.pop %v714
        %v716 = vmul.f32 %v685, 1.442695
        %v717 = vpow.pop %v716
        %v718 = vadd.f32 %v687, %v689
        %v719 = vadd.f32 %v718, %v691
        %v720 = vadd.f32 %v719, %v693
        %v721 = vadd.f32 %v720, %v695
        %v722 = vadd.f32 %v721, %v697
        %v723 = vadd.f32 %v722, %v699
        %v724 = vadd.f32 %v723, %v701
        %v725 = vadd.f32 %v724, %v703
        %v726 = vadd.f32 %v725, %v705
        %v727 = vadd.f32 %v726, %v707
        %v728 = vadd.f32 %v727, %v709
        %v729 = vadd.f32 %v728, %v711
        %v730 = vadd.f32 %v729, %v713
        %v731 = vadd.f32 %v730, %v715
        %v732 = vadd.f32 %v731, %v717
        %v733 = vrot.slane %v732, 4
        %v734 = vadd.f32 %v732, %v733
        %v735 = vrot.slane %v734, 2
        %v736 = vadd.f32 %v734, %v735
        %v737 = vrot.slane %v736, 1
        %v738 = vadd.f32 %v736, %v737
        %v739 = vrcp.pop %v738
        %v740 = vmul.f32 %v687, %v739
        %v741 = vmul.f32 %v689, %v739
        %v742 = vmul.f32 %v691, %v739
        %v743 = vmul.f32 %v693, %v739
        %v744 = vmul.f32 %v695, %v739
        %v745 = vmul.f32 %v697, %v739
        %v746 = vmul.f32 %v699, %v739
        %v747 = vmul.f32 %v701, %v739
        %v748 = vmul.f32 %v703, %v739
        %v749 = vmul.f32 %v705, %v739
        %v750 = vmul.f32 %v707, %v739
        %v751 = vmul.f32 %v709, %v739
        %v752 = vmul.f32 %v711, %v739
        %v753 = vmul.f32 %v713, %v739
        %v754 = vmul.f32 %v715, %v739
        %v755 = vmul.f32 %v717, %v739
        %v756 = vpack.c.bf16 %v741, %v740
        %v757 = vpack.c.bf16 %v743, %v742
        %v758 = vpack.c.bf16 %v745, %v744
        %v759 = vpack.c.bf16 %v747, %v746
        %v760 = vpack.c.bf16 %v749, %v748
        %v761 = vpack.c.bf16 %v751, %v750
        %v762 = vpack.c.bf16 %v753, %v752
        %v763 = vpack.c.bf16 %v755, %v754
        %764 = vmax.xlane.f32.xlu0 %v633
        %v765 = vpop.xlane.xlu0 %764
        %766 = vmax.xlane.f32.xlu0 %v634
        %v767 = vpop.xlane.xlu0 %766
        %768 = vmax.xlane.f32.xlu0 %v635
        %v769 = vpop.xlane.xlu0 %768
        %770 = vmax.xlane.f32.xlu0 %v636
        %v771 = vpop.xlane.xlu0 %770
        %772 = vmax.xlane.f32.xlu0 %v637
        %v773 = vpop.xlane.xlu0 %772
        %774 = vmax.xlane.f32.xlu0 %v638
        %v775 = vpop.xlane.xlu0 %774
        %776 = vmax.xlane.f32.xlu0 %v639
        %v777 = vpop.xlane.xlu0 %776
        %778 = vmax.xlane.f32.xlu0 %v640
        %v779 = vpop.xlane.xlu0 %778
        %780 = vmax.xlane.f32.xlu0 %v641
        %v781 = vpop.xlane.xlu0 %780
        %782 = vmax.xlane.f32.xlu0 %v642
        %v783 = vpop.xlane.xlu0 %782
        %784 = vmax.xlane.f32.xlu0 %v643
        %v785 = vpop.xlane.xlu0 %784
        %786 = vmax.xlane.f32.xlu0 %v644
        %v787 = vpop.xlane.xlu0 %786
        %788 = vmax.xlane.f32.xlu0 %v645
        %v789 = vpop.xlane.xlu0 %788
        %790 = vmax.xlane.f32.xlu0 %v646
        %v791 = vpop.xlane.xlu0 %790
        %792 = vmax.xlane.f32.xlu0 %v647
        %v793 = vpop.xlane.xlu0 %792
        %794 = vmax.xlane.f32.xlu0 %v648
        %v795 = vpop.xlane.xlu0 %794
        %v796 = vsub.f32 %v633, %v765
        %v797 = vsub.f32 %v634, %v767
        %v798 = vsub.f32 %v635, %v769
        %v799 = vsub.f32 %v636, %v771
        %v800 = vsub.f32 %v637, %v773
        %v801 = vsub.f32 %v638, %v775
        %v802 = vsub.f32 %v639, %v777
        %v803 = vsub.f32 %v640, %v779
        %v804 = vsub.f32 %v641, %v781
        %v805 = vsub.f32 %v642, %v783
        %v806 = vsub.f32 %v643, %v785
        %v807 = vsub.f32 %v644, %v787
        %v808 = vsub.f32 %v645, %v789
        %v809 = vsub.f32 %v646, %v791
        %v810 = vsub.f32 %v647, %v793
        %v811 = vsub.f32 %v648, %v795
        %v812 = vmul.f32 %v796, 1.442695
        %v813 = vpow.pop %v812
        %v814 = vmul.f32 %v797, 1.442695
        %v815 = vpow.pop %v814
        %v816 = vmul.f32 %v798, 1.442695
        %v817 = vpow.pop %v816
        %v818 = vmul.f32 %v799, 1.442695
        %v819 = vpow.pop %v818
        %v820 = vmul.f32 %v800, 1.442695
        %v821 = vpow.pop %v820
        %v822 = vmul.f32 %v801, 1.442695
        %v823 = vpow.pop %v822
        %v824 = vmul.f32 %v802, 1.442695
        %v825 = vpow.pop %v824
        %v826 = vmul.f32 %v803, 1.442695
        %v827 = vpow.pop %v826
        %v828 = vmul.f32 %v804, 1.442695
        %v829 = vpow.pop %v828
        %v830 = vmul.f32 %v805, 1.442695
        %v831 = vpow.pop %v830
        %v832 = vmul.f32 %v806, 1.442695
        %v833 = vpow.pop %v832
        %v834 = vmul.f32 %v807, 1.442695
        %v835 = vpow.pop %v834
        %v836 = vmul.f32 %v808, 1.442695
        %v837 = vpow.pop %v836
        %v838 = vmul.f32 %v809, 1.442695
        %v839 = vpow.pop %v838
        %v840 = vmul.f32 %v810, 1.442695
        %v841 = vpow.pop %v840
        %v842 = vmul.f32 %v811, 1.442695
        %v843 = vpow.pop %v842
        %844 = vadd.xlane.f32.xlu0 %v813
        %v845 = vpop.xlane.xlu0 %844
        %846 = vadd.xlane.f32.xlu0 %v815
        %v847 = vpop.xlane.xlu0 %846
        %848 = vadd.xlane.f32.xlu0 %v817
        %v849 = vpop.xlane.xlu0 %848
        %850 = vadd.xlane.f32.xlu0 %v819
        %v851 = vpop.xlane.xlu0 %850
        %852 = vadd.xlane.f32.xlu0 %v821
        %v853 = vpop.xlane.xlu0 %852
        %854 = vadd.xlane.f32.xlu0 %v823
        %v855 = vpop.xlane.xlu0 %854
        %856 = vadd.xlane.f32.xlu0 %v825
        %v857 = vpop.xlane.xlu0 %856
        %858 = vadd.xlane.f32.xlu0 %v827
        %v859 = vpop.xlane.xlu0 %858
        %860 = vadd.xlane.f32.xlu0 %v829
        %v861 = vpop.xlane.xlu0 %860
        %862 = vadd.xlane.f32.xlu0 %v831
        %v863 = vpop.xlane.xlu0 %862
        %864 = vadd.xlane.f32.xlu0 %v833
        %v865 = vpop.xlane.xlu0 %864
        %866 = vadd.xlane.f32.xlu0 %v835
        %v867 = vpop.xlane.xlu0 %866
        %868 = vadd.xlane.f32.xlu0 %v837
        %v869 = vpop.xlane.xlu0 %868
        %870 = vadd.xlane.f32.xlu0 %v839
        %v871 = vpop.xlane.xlu0 %870
        %872 = vadd.xlane.f32.xlu0 %v841
        %v873 = vpop.xlane.xlu0 %872
        %874 = vadd.xlane.f32.xlu0 %v843
        %v875 = vpop.xlane.xlu0 %874
        %v876 = vrcp.pop %v845
        %v877 = vrcp.pop %v847
        %v878 = vrcp.pop %v849
        %v879 = vrcp.pop %v851
        %v880 = vrcp.pop %v853
        %v881 = vrcp.pop %v855
        %v882 = vrcp.pop %v857
        %v883 = vrcp.pop %v859
        %v884 = vrcp.pop %v861
        %v885 = vrcp.pop %v863
        %v886 = vrcp.pop %v865
        %v887 = vrcp.pop %v867
        %v888 = vrcp.pop %v869
        %v889 = vrcp.pop %v871
        %v890 = vrcp.pop %v873
        %v891 = vrcp.pop %v875
        %v892 = vmul.f32 %v813, %v876
        %v893 = vmul.f32 %v815, %v877
        %v894 = vmul.f32 %v817, %v878
        %v895 = vmul.f32 %v819, %v879
        %v896 = vmul.f32 %v821, %v880
        %v897 = vmul.f32 %v823, %v881
        %v898 = vmul.f32 %v825, %v882
        %v899 = vmul.f32 %v827, %v883
        %v900 = vmul.f32 %v829, %v884
        %v901 = vmul.f32 %v831, %v885
        %v902 = vmul.f32 %v833, %v886
        %v903 = vmul.f32 %v835, %v887
        %v904 = vmul.f32 %v837, %v888
        %v905 = vmul.f32 %v839, %v889
        %v906 = vmul.f32 %v841, %v890
        %v907 = vmul.f32 %v843, %v891
        %v908 = vpack.c.bf16 %v893, %v892
        %v909 = vpack.c.bf16 %v895, %v894
        %v910 = vpack.c.bf16 %v897, %v896
        %v911 = vpack.c.bf16 %v899, %v898
        %v912 = vpack.c.bf16 %v901, %v900
        %v913 = vpack.c.bf16 %v903, %v902
        %v914 = vpack.c.bf16 %v905, %v904
        %v915 = vpack.c.bf16 %v907, %v906
        %916 = vmatpush.bf16.msra.mxu0 %v763
        %917 = vmatpush.bf16.msra.mxu0 %v762
        %918 = vmatpush.bf16.msra.mxu0 %v761
        %919 = vmatpush.bf16.msra.mxu0 %v760
        %920 = vmatpush.bf16.msra.mxu0 %v759
        %921 = vmatpush.bf16.msra.mxu0 %v758
        %922 = vmatpush.bf16.msra.mxu0 %v757
        %923 = vmatpush.bf16.msra.mxu0 %v756
        %924 = vmatmul.bf16.gmra.mxu0 %v423
        %v925 = vpop.f32.mrf.mxu0
        %v926 = vadd.f32 0.0, %v925
        %v927 = vpop.f32.mrf.mxu0
        %v928 = vadd.f32 0.0, %v927
        %929 = vmatmul.bf16.gmra.mxu0 %v424
        %v930 = vpop.f32.mrf.mxu0
        %v931 = vadd.f32 0.0, %v930
        %v932 = vpop.f32.mrf.mxu0
        %v933 = vadd.f32 0.0, %v932
        %934 = vdwg.mxu0
        %v939 = vunpack.c.l.b16 %v311
        %v940 = vunpack.c.l.b16 %v312
        %v941 = vunpack.c.l.b16 %v313
        %v942 = vunpack.c.l.b16 %v314
        %v943 = vpack.c.b16 %v940, %v939
        %v944 = vpack.c.b16 %v942, %v941
        %947 = vmatpush.bf16.xpose.msra.mxu0 %v915
        %948 = vmatpush.bf16.xpose.msra.mxu0 %v914
        %949 = vmatpush.bf16.xpose.msra.mxu0 %v913
        %950 = vmatpush.bf16.xpose.msra.mxu0 %v912
        %951 = vmatpush.bf16.xpose.msra.mxu0 %v911
        %952 = vmatpush.bf16.xpose.msra.mxu0 %v910
        %953 = vmatpush.bf16.xpose.msra.mxu0 %v909
        %954 = vmatpush.bf16.xpose.msra.mxu0 %v908
        %955 = vmatmul.bf16.gmra.mxu0 %v943
        %v956 = vpop.f32.mrf.mxu0
        %v957 = vadd.f32 0.0, %v956
        %v958 = vpop.f32.mrf.mxu0
        %v959 = vadd.f32 0.0, %v958
        %960 = vmatmul.bf16.gmra.mxu0 %v944
        %v961 = vpop.f32.mrf.mxu0
        %v962 = vadd.f32 0.0, %v961
        %v963 = vpop.f32.mrf.mxu0
        %v964 = vadd.f32 0.0, %v963
        %965 = vdwg.mxu0
        %v966 = vpack.c.bf16 %v959, %v957
        %v967 = vpack.c.bf16 %v964, %v962
        %968 = vmatpush.bf16.msra.mxu0 %v763
        %969 = vmatpush.bf16.msra.mxu0 %v762
        %970 = vmatpush.bf16.msra.mxu0 %v761
        %971 = vmatpush.bf16.msra.mxu0 %v760
        %972 = vmatpush.bf16.msra.mxu0 %v759
        %973 = vmatpush.bf16.msra.mxu0 %v758
        %974 = vmatpush.bf16.msra.mxu0 %v757
        %975 = vmatpush.bf16.msra.mxu0 %v756
        %976 = vmatmul.bf16.gmra.mxu0 %v966
        %v977 = vpop.f32.mrf.mxu0
        %v978 = vadd.f32 0.0, %v977
        %v979 = vpop.f32.mrf.mxu0
        %v980 = vadd.f32 0.0, %v979
        %981 = vmatmul.bf16.gmra.mxu0 %v967
        %v982 = vpop.f32.mrf.mxu0
        %v983 = vadd.f32 0.0, %v982
        %v984 = vpop.f32.mrf.mxu0
        %v985 = vadd.f32 0.0, %v984
        %986 = vdwg.mxu0
        %987 = vst [vmem:[%s286] sm:$0xf] %v311
        %988 = vst [vmem:[%s286 + $0x4] sm:$0xf] %v312
        %989 = vst [vmem:[%s286 + $0x8] sm:$0xf] %v313
        %990 = vst [vmem:[%s286 + $0xc] sm:$0xf] %v314
        %v991 = vpack.c.bf16 %v926, %v926
        %v992 = vpack.c.bf16 %v928, %v928
        %v993 = vpack.c.bf16 %v931, %v931
        %v994 = vpack.c.bf16 %v933, %v933
        %995 = vst [vmem:[%s286 + $0x10] sm:$0xf] %v991
        %996 = vst [vmem:[%s286 + $0x14] sm:$0xf] %v992
        %997 = vst [vmem:[%s286 + $0x18] sm:$0xf] %v993
        %998 = vst [vmem:[%s286 + $0x1c] sm:$0xf] %v994
        %v999 = vmul.f32 %v336, %v926
        %v1000 = vmul.f32 %v337, %v928
        %v1001 = vmul.f32 %v338, %v931
        %v1002 = vmul.f32 %v339, %v933
        %v1003 = vpack.c.bf16 %v999, %v999
        %v1004 = vpack.c.bf16 %v1000, %v1000
        %v1005 = vpack.c.bf16 %v1001, %v1001
        %v1006 = vpack.c.bf16 %v1002, %v1002
        %1007 = vst [vmem:[%s286 + $0x20] sm:$0xf] %v1003
        %1008 = vst [vmem:[%s286 + $0x24] sm:$0xf] %v1004
        %1009 = vst [vmem:[%s286 + $0x28] sm:$0xf] %v1005
        %1010 = vst [vmem:[%s286 + $0x2c] sm:$0xf] %v1006
        %v1011 = vmul.f32 %v336, %v978
        %v1012 = vmul.f32 %v337, %v980
        %v1013 = vmul.f32 %v338, %v983
        %v1014 = vmul.f32 %v339, %v985
        %v1015 = vpack.c.bf16 %v1011, %v1011
        %v1016 = vpack.c.bf16 %v1012, %v1012
        %v1017 = vpack.c.bf16 %v1013, %v1013
        %v1018 = vpack.c.bf16 %v1014, %v1014
        %1019 = vst [vmem:[%s286 + $0x30] sm:$0xf] %v1015
        %1020 = vst [vmem:[%s286 + $0x34] sm:$0xf] %v1016
        %1021 = vst [vmem:[%s286 + $0x38] sm:$0xf] %v1017
        %1022 = vst [vmem:[%s286 + $0x3c] sm:$0xf] %v1018
        %s1023 = sand.u32 %s175, 1
        %s1024 = scalar_lea.sflag [#allocation4], %s1023
        %s1025 = sand.u32 %s175, 1
        %s1026 = smul.addr %s1025, 64
        %s1027 = scalar_lea.vmem [#allocation3], %s1026
        // Predicated region
        $region45: #{tpu_custom_call.1} parent=43 // pred_check
          %p1028 = pneg %p185
        $region46: #{tpu_custom_call.1} parent=43 // pred_check_branch
          %1030 = sbr.rel (%p1028) target = $region48
        $region47: #{tpu_custom_call.1} parent=43 // pred_region
          %1032 = vsyncadd %s1024, 0
          %s1033 = smul.addr %s21, 16
          %s1034 = smul.addr %s1033, 4
          %s1035 = scalar_lea.hbm %s6, %s1034
          %s1036 = sshll.u32 %s1027, 4
          %s1037 = int_to_ptr.vmem [resolvable:$true] %s1036
          %s1038 = sshll.u32 %s1035, 4
          %s1039 = int_to_ptr.hbm [resolvable:$true] %s1038
          %1044 = dma.vmem_to_hbm [thread:$0]  %s1037, 1024, %s1039, %s1024, 64, 64, 4
        $region48: #{tpu_custom_call.1} parent=43 // pred_fallthru
          _
      $region44: #{tpu_custom_call.1} parent=5 // pred_fallthru
        _
      %p1045 = scmp.le.s32.totalorder 2, %s16
      // Predicated region
      $region49: #{tpu_custom_call.1} parent=5 // pred_check
        %p1046 = pneg %p1045
      $region50: #{tpu_custom_call.1} parent=5 // pred_check_branch
        %1048 = sbr.rel (%p1046) target = $region52
      $region51: #{tpu_custom_call.1} parent=5 // pred_region
        %s1049 = ssub.s32 %s16, 2
        // Predicated region
        $region53: #{tpu_custom_call.1} parent=51 // pred_check
          %p1050 = pneg %p191
        $region54: #{tpu_custom_call.1} parent=51 // pred_check_branch
          %1052 = sbr.rel (%p1050) target = $region56
        $region55: #{tpu_custom_call.1} parent=51 // pred_region
          %s1053 = sand.u32 %s176, 1
          %s1054 = scalar_lea.sflag [#allocation4], %s1053
          %s1055 = sand.u32 %s176, 1
          %s1056 = smul.addr %s1055, 64
          %s1057 = scalar_lea.vmem [#allocation3], %s1056
          %1059 = dma.done %s1054, 1024
        $region56: #{tpu_custom_call.1} parent=51 // pred_fallthru
          _
      $region52: #{tpu_custom_call.1} parent=5 // pred_fallthru
        _
    $region6: #{tpu_custom_call.1} parent=1 // loop_footer
      %s20 = sadd.s32 1, %s16
    $region7: #{tpu_custom_call.1} parent=1 // loop_footer_branch
      %15 = sbr.rel target = $region3
    $region8: #{tpu_custom_call.1} parent=1 // loop_exit
      _
    %1060 = vsyncpa [#allocation4], 1
    %s1061 = scalar_lea.sflag [#allocation4], 1
    %1062 = vsyncpa %s1061, 1

</llo_original>
